<compile_context>
chip_gen: v7x
topology: tpu7x:2x2x1
jax: 0.10.0
libtpu: 0.0.40
codegen_flags: <defaults>
</compile_context>

<pallas_src>
import functools

import jax
import jax.numpy as jnp
from jax.experimental import pallas as pl
from jax.experimental.pallas import tpu as pltpu


def _adaptive_bin_boundaries(L, out_size):
    """Static (start, end) per output bin, matching torch AdaptiveMaxPool1d."""
    return [((i * L) // out_size, -((-(i + 1) * L) // out_size)) for i in range(out_size)]


def _make_spp_kernel(spp_windows, L, out_w):
    """Kernel over one (TR, L) row block -> one (TR, out_w) output block."""
    total = sum(spp_windows)
    finest = max(spp_windows)
    fine_bounds = tuple(_adaptive_bin_boundaries(L, finest))

    def kernel(x_ref, o_ref):
        # Static ref slices are zero-cost views: each bin loads only the lanes it reduces,
        # never materializing the full (TR, L) block as a separate VMEM temporary.
        fine_cols = [
            jnp.max(x_ref[:, s:e], axis=1, keepdims=True) for (s, e) in fine_bounds
        ]
        pieces = []
        for w in spp_windows:
            if finest % w == 0:
                # Hierarchical pyramid: coarse bin = elementwise max of adjacent fine bins
                # (exact because adaptive bin boundaries nest when w divides finest).
                r = finest // w
                pieces.extend(
                    functools.reduce(jnp.maximum, fine_cols[i * r:(i + 1) * r])
                    for i in range(w)
                )
            else:
                # Non-nesting window: exact per-bin cross-lane reduce fallback.
                pieces.extend(
                    jnp.max(x_ref[:, s:e], axis=1, keepdims=True)
                    for (s, e) in _adaptive_bin_boundaries(L, w)
                )
        if out_w > total:
            pieces.append(jnp.zeros((o_ref.shape[0], out_w - total), dtype=o_ref.dtype))
        # Single wide store per block.
        o_ref[...] = jnp.concatenate(pieces, axis=1)

    return kernel


@functools.partial(jax.jit, static_argnames=("spp_windows",))
def spp_layer(x, spp_windows):
    """x: (N, C, L) float array. Returns (N, C * sum(spp_windows))."""
    N, C, L = x.shape
    total = sum(spp_windows)
    itemsize = jnp.dtype(x.dtype).itemsize
    sub = {4: 8, 2: 16, 1: 32}.get(itemsize, 8)  # sublane packing granularity

    # ---- output width --------------------------------------------------------------
    # Lane-dense (multiple-of-128) output blocks give unmasked stores, but when L is
    # short the zero-padded writes become a large fraction of HBM traffic, so only pad
    # when the input block dwarfs the output block.
    if total % 128 == 0:
        out_w = total
    elif L >= 8 * 128:
        out_w = -(-total // 128) * 128      # padding write traffic is negligible here
    else:
        out_w = total                       # narrow masked stores, minimal HBM writes

    # ---- per-generation VMEM sizing --------------------------------------------------
    try:
        vmem_cap = int(pltpu.get_tpu_info().vmem_capacity_bytes)
    except Exception:  # info unavailable -> assume the smallest VMEM (v7x, 64 MiB/TC)
        vmem_cap = 64 * 1024 * 1024
    vmem_limit = (vmem_cap * 3) // 4        # ~96 MiB on v5e/v6e, ~48 MiB on v7x
    vmem_budget = vmem_limit // 2           # headroom for double buffers + concat temps

    # Bytes per row per pipeline step: double-buffered input + output blocks plus the
    # in-flight bin columns / concatenate temporary.
    per_row_bytes = (2 * (L + out_w) + total + out_w) * itemsize

    rows = N * C
    rows_aligned = -(-rows // sub) * sub
    groups = rows_aligned // sub            # row tiles counted in sublane groups

    # Row-tile size (in sublane groups): fit the VMEM budget, keep >= 8 pipeline steps
    # when there are enough rows (DMA/compute overlap + work for both v7x TensorCores),
    # and divide `groups` exactly so no rows beyond sublane alignment are ever padded.
    vmem_groups = max(1, vmem_budget // max(per_row_bytes * sub, 1))
    step_groups = max(1, groups // 8)
    cap_groups = max(1, min(groups, vmem_groups, step_groups))
    d = 1
    for cand in range(cap_groups, 0, -1):
        if groups % cand == 0:
            d = cand
            break
    tr = d * sub
    # TODO(synk): if L is so large that even a single-sublane-group block exceeds the VMEM
    # budget, add a second "arbitrary" grid axis over L with a running-max accumulator.

    x2d = x.reshape(rows, L)
    if rows_aligned != rows:
        # Pad only to the sublane multiple (< sub extra rows); padded rows are
        # garbage-but-harmless and sliced off below.
        x2d = jnp.pad(x2d, ((0, rows_aligned - rows), (0, 0)))

    out2d = pl.pallas_call(
        _make_spp_kernel(tuple(spp_windows), L, out_w),
        out_shape=jax.ShapeDtypeStruct((rows_aligned, out_w), x.dtype),
        grid=(rows_aligned // tr,),
        in_specs=[pl.BlockSpec((tr, L), lambda i: (i, 0))],
        out_specs=pl.BlockSpec((tr, out_w), lambda i: (i, 0)),
        compiler_params=pltpu.CompilerParams(
            dimension_semantics=("parallel",),
            vmem_limit_bytes=vmem_limit,
        ),
    )(x2d)

    # Drop row/lane padding, then reassemble exactly like torch:
    # [pool_w(x).view(N, -1) for w] followed by cat(dim=1).
    out2d = out2d[:rows, :total]
    out3d = out2d.reshape(N, C, total)
    pieces = []
    off = 0
    for w in spp_windows:
        pieces.append(out3d[:, :, off:off + w].reshape(N, C * w))
        off += w
    return jnp.concatenate(pieces, axis=1)


def _spp_reference(x, spp_windows):
    """Pure-JAX reference (mirrors torch AdaptiveMaxPool1d)."""
    N, C, L = x.shape
    pieces = []
    for out_size in spp_windows:
        cols = []
        for s, e in _adaptive_bin_boundaries(L, out_size):
            cols.append(jnp.max(x[:, :, s:e], axis=2, keepdims=True))
        pooled = jnp.concatenate(cols, axis=2)  # (N, C, out_size)
        pieces.append(pooled.reshape(N, C * out_size))
    return jnp.concatenate(pieces, axis=1)


if __name__ == "__main__":
    key = jax.random.PRNGKey(0)

    # Primary small example consistent with the module's forward.
    N, C, L = 2, 4, 16
    spp_windows = (1, 2, 4)
    x = jax.random.normal(key, (N, C, L), dtype=jnp.float32)
    out = jax.block_until_ready(spp_layer(x, spp_windows))
    ref = _spp_reference(x, spp_windows)
    assert out.shape == (N, C * sum(spp_windows)), out.shape
    assert jnp.allclose(out, ref), "mismatch vs reference (nested windows)"

    # Multi-block grid path (several pipeline steps) + nested pyramid.
    k2 = jax.random.PRNGKey(1)
    x2 = jax.random.normal(k2, (4, 32, 256), dtype=jnp.float32)
    out2 = jax.block_until_ready(spp_layer(x2, (1, 2, 4)))
    assert jnp.allclose(out2, _spp_reference(x2, (1, 2, 4))), "mismatch (multi-block)"

    # Non-nesting window sizes exercise the per-bin fallback path.
    k3 = jax.random.PRNGKey(2)
    x3 = jax.random.normal(k3, (2, 4, 16), dtype=jnp.float32)
    out3 = jax.block_until_ready(spp_layer(x3, (3, 5)))
    assert jnp.allclose(out3, _spp_reference(x3, (3, 5))), "mismatch (non-nested windows)"

    print("KERNEL_OK")
</pallas_src>

<mosaic_0001>
module attributes {stable_mosaic.version = 11 : i64} {
  func.func @kernel(%arg0: i32, %arg1: memref<8x16xf32, #tpu.memory_space<vmem>>, %arg2: memref<8x7xf32, #tpu.memory_space<vmem>>) attributes {dimension_semantics = [#tpu.dimension_semantics<parallel>], iteration_bounds = array<i64: 1>, scalar_prefetch = 0 : i64, scratch_operands = 0 : i64, tpu.core_type = #tpu.core_type<tc>, window_params = [{transform_indices = @transform_0, window_bounds = array<i64: 8, 16>}, {transform_indices = @transform_1, window_bounds = array<i64: 8, 7>}]} {
    %c0 = arith.constant 0 : index
    %c0_0 = arith.constant 0 : index
    %0 = vector.load %arg1[%c0, %c0_0] : memref<8x16xf32, #tpu.memory_space<vmem>>, vector<8x4xf32>
    %cst = arith.constant dense<0xFF800000> : vector<8xf32>
    %1 = vector.multi_reduction <maximumf>, %0, %cst [1] : vector<8x4xf32> to vector<8xf32>
    %2 = vector.shape_cast %1 : vector<8xf32> to vector<8x1xf32>
    %c0_1 = arith.constant 0 : index
    %c4 = arith.constant 4 : index
    %3 = vector.load %arg1[%c0_1, %c4] : memref<8x16xf32, #tpu.memory_space<vmem>>, vector<8x4xf32>
    %cst_2 = arith.constant dense<0xFF800000> : vector<8xf32>
    %4 = vector.multi_reduction <maximumf>, %3, %cst_2 [1] : vector<8x4xf32> to vector<8xf32>
    %5 = vector.shape_cast %4 : vector<8xf32> to vector<8x1xf32>
    %c0_3 = arith.constant 0 : index
    %c8 = arith.constant 8 : index
    %6 = vector.load %arg1[%c0_3, %c8] : memref<8x16xf32, #tpu.memory_space<vmem>>, vector<8x4xf32>
    %cst_4 = arith.constant dense<0xFF800000> : vector<8xf32>
    %7 = vector.multi_reduction <maximumf>, %6, %cst_4 [1] : vector<8x4xf32> to vector<8xf32>
    %8 = vector.shape_cast %7 : vector<8xf32> to vector<8x1xf32>
    %c0_5 = arith.constant 0 : index
    %c12 = arith.constant 12 : index
    %9 = vector.load %arg1[%c0_5, %c12] : memref<8x16xf32, #tpu.memory_space<vmem>>, vector<8x4xf32>
    %cst_6 = arith.constant dense<0xFF800000> : vector<8xf32>
    %10 = vector.multi_reduction <maximumf>, %9, %cst_6 [1] : vector<8x4xf32> to vector<8xf32>
    %11 = vector.shape_cast %10 : vector<8xf32> to vector<8x1xf32>
    %12 = arith.maximumf %2, %5 : vector<8x1xf32>
    %13 = arith.maximumf %12, %8 : vector<8x1xf32>
    %14 = arith.maximumf %13, %11 : vector<8x1xf32>
    %15 = arith.maximumf %2, %5 : vector<8x1xf32>
    %16 = arith.maximumf %8, %11 : vector<8x1xf32>
    %17 = tpu.concatenate %14, %15, %16, %2, %5, %8, %11 in 1 : vector<8x1xf32>, vector<8x1xf32>, vector<8x1xf32>, vector<8x1xf32>, vector<8x1xf32>, vector<8x1xf32>, vector<8x1xf32> -> vector<8x7xf32>
    %c0_7 = arith.constant 0 : index
    %c0_8 = arith.constant 0 : index
    %18 = vector.load %arg2[%c0_7, %c0_8] : memref<8x7xf32, #tpu.memory_space<vmem>>, vector<8x7xf32>
    tpu.vector_store %arg2[%c0_7, %c0_8], %17 {strides = array<i32>} : memref<8x7xf32, #tpu.memory_space<vmem>>, vector<8x7xf32>,
    return
  }
  func.func @transform_0(%arg0: i32) -> (i32, i32) {
    %c0_i32 = arith.constant 0 : i32
    %c0_i32_0 = arith.constant 0 : i32
    return %arg0, %c0_i32 : i32, i32
  }
  func.func @transform_1(%arg0: i32) -> (i32, i32) {
    %c0_i32 = arith.constant 0 : i32
    %c0_i32_0 = arith.constant 0 : i32
    return %arg0, %c0_i32 : i32, i32
  }
}

</mosaic_0001>

<llo_original>
// kernel: spp_layer.1
$region0: #{spp_layer.1}
  #allocation0 [shape = 'u32[]', space=smem, size = 0x4, offset = 0x4, fixed_abs, tag = 'smem constant byte address 0x4 - core index']
  #allocation1 [shape = 'u32[144,128]{1,0:T(1,128)}', space=vmem, size = 0x12000, scoped, tag = 'internal scratch']
  %s0 = inlined_call_operand.hbm [shape: f32[8,16], index: 0, kind: input, shape index: {}]
  %s1 = inlined_call_operand.vmem [shape: f32[8,7], index: 1, kind: output, shape index: {}]
  %s2 = sld [smem:[#allocation0]]
  $region18: #{spp_layer.1} parent=0
    _
  %s4 = ssub.s32 1, %s2
  %s5 = scalar_select 0, %s4, %s2
  $region1: #{spp_layer.1} parent=0
    #allocation2 [shape = 'u8[4096]{0}', space=vmem, size = 0x1000, scoped, tag = 'input window, operand 0, single buffered']
    #allocation3 [shape = 's32[1]{0}', space=sflag, size = 0x4, scoped, tag = 'scoped memory for spp_layer.1']
    %6 = vsyncpa [#allocation3], 0
    // Predicated region
    $region2: #{spp_layer.1} parent=1 // pred_check
      _
    $region3: #{spp_layer.1} parent=1 // pred_check_branch
      %8 = sbr.rel (0) target = $region5
    $region4: #{spp_layer.1} parent=1 // pred_region
      %s10 = ssub.s32 128, 128
      %11 = vsyncadd [#allocation3], %s10
      %s13 = sshll.u32 [#allocation2], 4
      %s14 = int_to_ptr.vmem [resolvable:$true] %s13
      %16 = dma.hbm_to_vmem [thread:$0]  %s0, 128, %s14, [#allocation3]
    $region5: #{spp_layer.1} parent=1 // pred_fallthru
      _
    // Predicated region
    $region6: #{spp_layer.1} parent=1 // pred_check
      _
    $region7: #{spp_layer.1} parent=1 // pred_check_branch
      %18 = sbr.rel (0) target = $region9
    $region8: #{spp_layer.1} parent=1 // pred_region
      %19 = dma.done [#allocation3], 128
    $region9: #{spp_layer.1} parent=1 // pred_fallthru
      _
    %v20 = vld [vmem:[#allocation2] sm:$0xff]
    %vm21 = vcmask 31744
    %v22 = vsel %vm21, %v20, -inf
    %23 = vmax.xlane.f32.xlu0 %v22
    %v24 = vpop.xlane.xlu0 %23
    %vm25 = vcmask 64544
    %v26 = vsel %vm25, %v20, -inf
    %27 = vmax.xlane.f32.xlu0 %v26
    %v28 = vpop.xlane.xlu0 %27
    %vm29 = vcmask 97344
    %v30 = vsel %vm29, %v20, -inf
    %31 = vmax.xlane.f32.xlu0 %v30
    %v32 = vpop.xlane.xlu0 %31
    %vm33 = vcmask 130144
    %v34 = vsel %vm33, %v20, -inf
    %35 = vmax.xlane.f32.xlu0 %v34
    %v36 = vpop.xlane.xlu0 %35
    %v37 = vmax.f32 %v24, %v28
    %v38 = vmax.f32 %v37, %v32
    %v39 = vmax.f32 %v38, %v36
    %v40 = vmax.f32 %v32, %v36
    %vm41 = vcmask 7168
    %v42 = vsel %vm41, %v39, %v37
    %vm43 = vcmask 15360
    %v44 = vsel %vm43, %v42, %v40
    %vm45 = vcmask 23552
    %v46 = vsel %vm45, %v44, %v24
    %v47 = vsel %vm21, %v46, %v28
    %vm48 = vcmask 39936
    %v49 = vsel %vm48, %v47, %v32
    %vm50 = vcmask 48128
    %v51 = vsel %vm50, %v49, %v36
    %vm52 = vcmask 56320
    %53 = vst.msk [vmem:[%s1] sm:$0xff] %vm52, %v51
    // Predicated region
    $region10: #{spp_layer.1} parent=1 // pred_check
      _
    $region11: #{spp_layer.1} parent=1 // pred_check_branch
      %55 = sbr.rel (0) target = $region13
    $region12: #{spp_layer.1} parent=1 // pred_region
      _
    $region13: #{spp_layer.1} parent=1 // pred_fallthru
      _
    // Predicated region
    $region14: #{spp_layer.1} parent=1 // pred_check
      _
    $region15: #{spp_layer.1} parent=1 // pred_check_branch
      %57 = sbr.rel (0) target = $region17
    $region16: #{spp_layer.1} parent=1 // pred_region
      _
    $region17: #{spp_layer.1} parent=1 // pred_fallthru
      _
    %58 = vsyncpa [#allocation3], 1

</llo_original>
